<compile_context>
chip_gen: v5e
topology: v5e:2x2
jax: 0.10.0
libtpu: 0.0.40
codegen_flags: <defaults>
</compile_context>

<pallas_src>
import jax
import jax.numpy as jnp
from jax.experimental import pallas as pl
from jax.experimental.pallas import tpu as pltpu

EPS = 1e-5


def _round_up(n, m):
    return ((n + m - 1) // m) * m


def mlp_kernel(x_ref, w1_ref, b1_ref, w2_ref, b2_ref, w3_ref, b3_ref,
               w4_ref, b4_ref, o_ref):
    # x_ref: (D_in, TB) — batch tile on the lane axis.
    x = x_ref[...]

    # Blocks 1..3: folded (Linear + eval-mode BN), then Tanh.
    h = jnp.tanh(jnp.dot(w1_ref[...], x, preferred_element_type=jnp.float32)
                 + b1_ref[...])
    h = jnp.tanh(jnp.dot(w2_ref[...], h, preferred_element_type=jnp.float32)
                 + b2_ref[...])
    h = jnp.tanh(jnp.dot(w3_ref[...], h, preferred_element_type=jnp.float32)
                 + b3_ref[...])

    # Head Linear(H2 -> 1): VPU multiply + sublane reduction instead of a
    # 1-row MXU matmul; output (1, TB) is lane-dense.
    o_ref[...] = jnp.sum(w4_ref[...] * h, axis=0, keepdims=True) + b4_ref[...]


def fold_params(p):
    """Fold eval-mode BatchNorm (and the Linear bias) into the Linear weights.

    Exact affine rewrite (W in PyTorch (out, in) layout):
      scale = gamma * rsqrt(var + eps)
      W'    = diag(scale) @ W
      b'    = scale * (b - mean) + beta
    """
    def fold(w, b, g, beta, m, v):
        s = g * jax.lax.rsqrt(v + EPS)
        return w * s[:, None], (b - m) * s + beta

    w1, b1 = fold(p["w1"], p["b1"], p["g1"], p["be1"], p["m1"], p["v1"])
    w2, b2 = fold(p["w2"], p["b2"], p["g2"], p["be2"], p["m2"], p["v2"])
    w3, b3 = fold(p["w3"], p["b3"], p["g3"], p["be3"], p["m3"], p["v3"])
    return dict(
        w1=w1, b1=b1[:, None],          # (H, D_in), (H, 1)
        w2=w2, b2=b2[:, None],          # (H2, H),  (H2, 1)
        w3=w3, b3=b3[:, None],          # (H2, H2), (H2, 1)
        w4=p["w4"].T,                   # (H2, 1)
        b4=p["b4"][:, None],            # (1, 1)
    )


def nn_forward(x, params, *, batch_tile=1024):
    """x: (B, D_in) f32. params: raw PyTorch-layout parameters (init_params)."""
    B, d_in = x.shape
    fp = fold_params(params)
    h = fp["w1"].shape[0]
    h2 = fp["w2"].shape[0]

    # Lane-dense batch tile: a multiple of 128; pad B up to whole tiles.
    tb = min(batch_tile, max(128, _round_up(B, 128)))
    bp = _round_up(B, tb)

    # Batch on lanes: kernel works on x^T (padded rows are zeros -> finite).
    xt = jnp.pad(x, ((0, bp - B), (0, 0))).T                 # (D_in, Bp)

    grid = (bp // tb,)
    const = lambda i: (0, 0)

    flops = 2 * bp * (d_in * h + h * h2 + h2 * h2 + h2)
    transcendentals = bp * (h + 2 * h2)
    param_bytes = 4 * (h * d_in + h + h2 * h + h2 + h2 * h2 + h2 + h2 + 1)
    bytes_accessed = 4 * bp * (d_in + 1) + param_bytes

    out_t = pl.pallas_call(
        mlp_kernel,
        out_shape=jax.ShapeDtypeStruct((1, bp), jnp.float32),
        grid=grid,
        in_specs=[
            pl.BlockSpec((d_in, tb), lambda i: (0, i)),      # x^T batch tile
            pl.BlockSpec(fp["w1"].shape, const),
            pl.BlockSpec(fp["b1"].shape, const),
            pl.BlockSpec(fp["w2"].shape, const),
            pl.BlockSpec(fp["b2"].shape, const),
            pl.BlockSpec(fp["w3"].shape, const),
            pl.BlockSpec(fp["b3"].shape, const),
            pl.BlockSpec(fp["w4"].shape, const),
            pl.BlockSpec(fp["b4"].shape, const),
        ],
        out_specs=pl.BlockSpec((1, tb), lambda i: (0, i)),
        compiler_params=pltpu.CompilerParams(
            dimension_semantics=("parallel",)),
        cost_estimate=pl.CostEstimate(
            flops=flops,
            transcendentals=transcendentals,
            bytes_accessed=bytes_accessed),
    )(xt, fp["w1"], fp["b1"], fp["w2"], fp["b2"],
      fp["w3"], fp["b3"], fp["w4"], fp["b4"])

    return out_t.T[:B]                                       # (B, 1)


def init_params(key, input_size, layer_size):
    """Deterministic synthetic parameters in PyTorch-natural layouts.

    Linear weights are (out, in); biases / BN per-feature vectors are (F,).
    """
    h = layer_size
    h2 = layer_size // 2
    keys = jax.random.split(key, 16)

    def lin(kw, kb, fan_in, fan_out):
        bound = 1.0 / jnp.sqrt(fan_in)
        w = jax.random.uniform(kw, (fan_out, fan_in), jnp.float32, -bound, bound)
        b = jax.random.uniform(kb, (fan_out,), jnp.float32, -bound, bound)
        return w, b

    w1, b1 = lin(keys[0], keys[1], input_size, h)
    w2, b2 = lin(keys[2], keys[3], h, h2)
    w3, b3 = lin(keys[4], keys[5], h2, h2)
    w4, b4 = lin(keys[6], keys[7], h2, 1)

    def bn(kg, kb, f):
        g = 1.0 + 0.1 * jax.random.normal(kg, (f,), jnp.float32)
        be = 0.1 * jax.random.normal(kb, (f,), jnp.float32)
        m = 0.05 * jax.random.normal(jax.random.fold_in(kg, 1), (f,), jnp.float32)
        v = 1.0 + 0.1 * jax.random.uniform(jax.random.fold_in(kb, 1), (f,), jnp.float32)
        return g, be, m, v

    g1, be1, m1, v1 = bn(keys[8], keys[9], h)
    g2, be2, m2, v2 = bn(keys[10], keys[11], h2)
    g3, be3, m3, v3 = bn(keys[12], keys[13], h2)

    return dict(
        w1=w1, b1=b1, g1=g1, be1=be1, m1=m1, v1=v1,
        w2=w2, b2=b2, g2=g2, be2=be2, m2=m2, v2=v2,
        w3=w3, b3=b3, g3=g3, be3=be3, m3=m3, v3=v3,
        w4=w4, b4=b4,
    )


def nn_forward_ref(x, p):
    """Pure-JAX eval-mode reference using the RAW (un-folded) parameters."""
    def bn(z, g, be, m, v):
        return (z - m) / jnp.sqrt(v + EPS) * g + be
    h1 = jnp.tanh(bn(x @ p["w1"].T + p["b1"], p["g1"], p["be1"], p["m1"], p["v1"]))
    h2 = jnp.tanh(bn(h1 @ p["w2"].T + p["b2"], p["g2"], p["be2"], p["m2"], p["v2"]))
    h3 = jnp.tanh(bn(h2 @ p["w3"].T + p["b3"], p["g3"], p["be3"], p["m3"], p["v3"]))
    return h3 @ p["w4"].T + p["b4"]


if __name__ == "__main__":
    input_size = 16
    layer_size = 32
    batch = 8

    key = jax.random.PRNGKey(0)
    kx, kp = jax.random.split(key)
    x = jax.random.normal(kx, (batch, input_size), jnp.float32)
    params = init_params(kp, input_size, layer_size)

    out = nn_forward(x, params)
    jax.block_until_ready(out)
    ref = nn_forward_ref(x, params)
    assert out.shape == (batch, 1)
    # Fold + transposed matmul reorder FP ops slightly; tolerance reflects that.
    assert jnp.allclose(out, ref, atol=1e-4, rtol=1e-4)

    # Exercise a multi-step grid (padding + tiling path) with a small tile.
    x2 = jax.random.normal(jax.random.fold_in(kx, 1), (300, input_size), jnp.float32)
    out2 = nn_forward(x2, params, batch_tile=128)
    jax.block_until_ready(out2)
    ref2 = nn_forward_ref(x2, params)
    assert out2.shape == (300, 1)
    assert jnp.allclose(out2, ref2, atol=1e-4, rtol=1e-4)

    print("KERNEL_OK")
</pallas_src>

<mosaic_0001>
module attributes {stable_mosaic.version = 11 : i64} {
  func.func @mlp_kernel(%arg0: i32, %arg1: memref<16x128xf32, #tpu.memory_space<vmem>>, %arg2: memref<32x16xf32, #tpu.memory_space<vmem>>, %arg3: memref<32x1xf32, #tpu.memory_space<vmem>>, %arg4: memref<16x32xf32, #tpu.memory_space<vmem>>, %arg5: memref<16x1xf32, #tpu.memory_space<vmem>>, %arg6: memref<16x16xf32, #tpu.memory_space<vmem>>, %arg7: memref<16x1xf32, #tpu.memory_space<vmem>>, %arg8: memref<16x1xf32, #tpu.memory_space<vmem>>, %arg9: memref<1x1xf32, #tpu.memory_space<vmem>>, %arg10: memref<1x128xf32, #tpu.memory_space<vmem>>) attributes {dimension_semantics = [#tpu.dimension_semantics<parallel>], iteration_bounds = array<i64: 1>, scalar_prefetch = 0 : i64, scratch_operands = 0 : i64, tpu.core_type = #tpu.core_type<tc>, window_params = [{transform_indices = @transform_0, window_bounds = array<i64: 16, 128>}, {pipeline_mode = #tpu.pipeline_mode<synchronous>, transform_indices = @transform_1, window_bounds = array<i64: 32, 16>}, {pipeline_mode = #tpu.pipeline_mode<synchronous>, transform_indices = @transform_2, window_bounds = array<i64: 32, 1>}, {pipeline_mode = #tpu.pipeline_mode<synchronous>, transform_indices = @transform_3, window_bounds = array<i64: 16, 32>}, {pipeline_mode = #tpu.pipeline_mode<synchronous>, transform_indices = @transform_4, window_bounds = array<i64: 16, 1>}, {pipeline_mode = #tpu.pipeline_mode<synchronous>, transform_indices = @transform_5, window_bounds = array<i64: 16, 16>}, {pipeline_mode = #tpu.pipeline_mode<synchronous>, transform_indices = @transform_6, window_bounds = array<i64: 16, 1>}, {pipeline_mode = #tpu.pipeline_mode<synchronous>, transform_indices = @transform_7, window_bounds = array<i64: 16, 1>}, {pipeline_mode = #tpu.pipeline_mode<synchronous>, transform_indices = @transform_8, window_bounds = array<i64: 1, 1>}, {transform_indices = @transform_9, window_bounds = array<i64: 1, 128>}]} {
    %c0 = arith.constant 0 : index
    %c0_0 = arith.constant 0 : index
    %0 = vector.load %arg1[%c0, %c0_0] : memref<16x128xf32, #tpu.memory_space<vmem>>, vector<16x128xf32>
    %c0_1 = arith.constant 0 : index
    %c0_2 = arith.constant 0 : index
    %1 = vector.load %arg2[%c0_1, %c0_2] : memref<32x16xf32, #tpu.memory_space<vmem>>, vector<32x16xf32>
    %cst = arith.constant dense<0.000000e+00> : vector<32x128xf32>
    %2 = tpu.matmul %1, %0, %cst {dimension_numbers = #tpu.dot_dimension_numbers<[1], [0], [0], [1], [0, 0, 1, 1], [], []>} : vector<32x16xf32>, vector<16x128xf32>, vector<32x128xf32> -> vector<32x128xf32>
    %c0_3 = arith.constant 0 : index
    %c0_4 = arith.constant 0 : index
    %3 = vector.load %arg3[%c0_3, %c0_4] : memref<32x1xf32, #tpu.memory_space<vmem>>, vector<32x1xf32>
    %4 = vector.broadcast %3 : vector<32x1xf32> to vector<32x128xf32>
    %5 = arith.addf %2, %4 : vector<32x128xf32>
    %6 = math.tanh %5 : vector<32x128xf32>
    %c0_5 = arith.constant 0 : index
    %c0_6 = arith.constant 0 : index
    %7 = vector.load %arg4[%c0_5, %c0_6] : memref<16x32xf32, #tpu.memory_space<vmem>>, vector<16x32xf32>
    %cst_7 = arith.constant dense<0.000000e+00> : vector<16x128xf32>
    %8 = tpu.matmul %7, %6, %cst_7 {dimension_numbers = #tpu.dot_dimension_numbers<[1], [0], [0], [1], [0, 0, 1, 1], [], []>} : vector<16x32xf32>, vector<32x128xf32>, vector<16x128xf32> -> vector<16x128xf32>
    %c0_8 = arith.constant 0 : index
    %c0_9 = arith.constant 0 : index
    %9 = vector.load %arg5[%c0_8, %c0_9] : memref<16x1xf32, #tpu.memory_space<vmem>>, vector<16x1xf32>
    %10 = vector.broadcast %9 : vector<16x1xf32> to vector<16x128xf32>
    %11 = arith.addf %8, %10 : vector<16x128xf32>
    %12 = math.tanh %11 : vector<16x128xf32>
    %c0_10 = arith.constant 0 : index
    %c0_11 = arith.constant 0 : index
    %13 = vector.load %arg6[%c0_10, %c0_11] : memref<16x16xf32, #tpu.memory_space<vmem>>, vector<16x16xf32>
    %cst_12 = arith.constant dense<0.000000e+00> : vector<16x128xf32>
    %14 = tpu.matmul %13, %12, %cst_12 {dimension_numbers = #tpu.dot_dimension_numbers<[1], [0], [0], [1], [0, 0, 1, 1], [], []>} : vector<16x16xf32>, vector<16x128xf32>, vector<16x128xf32> -> vector<16x128xf32>
    %c0_13 = arith.constant 0 : index
    %c0_14 = arith.constant 0 : index
    %15 = vector.load %arg7[%c0_13, %c0_14] : memref<16x1xf32, #tpu.memory_space<vmem>>, vector<16x1xf32>
    %16 = vector.broadcast %15 : vector<16x1xf32> to vector<16x128xf32>
    %17 = arith.addf %14, %16 : vector<16x128xf32>
    %18 = math.tanh %17 : vector<16x128xf32>
    %c0_15 = arith.constant 0 : index
    %c0_16 = arith.constant 0 : index
    %19 = vector.load %arg8[%c0_15, %c0_16] : memref<16x1xf32, #tpu.memory_space<vmem>>, vector<16x1xf32>
    %20 = vector.broadcast %19 : vector<16x1xf32> to vector<16x128xf32>
    %21 = arith.mulf %20, %18 : vector<16x128xf32>
    %cst_17 = arith.constant dense<0.000000e+00> : vector<128xf32>
    %22 = vector.multi_reduction <add>, %21, %cst_17 [0] : vector<16x128xf32> to vector<128xf32>
    %23 = vector.shape_cast %22 : vector<128xf32> to vector<1x128xf32>
    %c0_18 = arith.constant 0 : index
    %c0_19 = arith.constant 0 : index
    %24 = vector.load %arg9[%c0_18, %c0_19] : memref<1x1xf32, #tpu.memory_space<vmem>>, vector<1x1xf32>
    %25 = vector.broadcast %24 : vector<1x1xf32> to vector<1x128xf32>
    %26 = arith.addf %23, %25 : vector<1x128xf32>
    %c0_20 = arith.constant 0 : index
    %c0_21 = arith.constant 0 : index
    %27 = vector.load %arg10[%c0_20, %c0_21] : memref<1x128xf32, #tpu.memory_space<vmem>>, vector<1x128xf32>
    tpu.vector_store %arg10[%c0_20, %c0_21], %26 {strides = array<i32>} : memref<1x128xf32, #tpu.memory_space<vmem>>, vector<1x128xf32>,
    return
  }
  func.func @transform_0(%arg0: i32) -> (i32, i32) {
    %c0_i32 = arith.constant 0 : i32
    %c0_i32_0 = arith.constant 0 : i32
    return %c0_i32, %arg0 : i32, i32
  }
  func.func @transform_1(%arg0: i32) -> (i32, i32) {
    %c0_i32 = arith.constant 0 : i32
    %c0_i32_0 = arith.constant 0 : i32
    %c0_i32_1 = arith.constant 0 : i32
    return %c0_i32, %c0_i32_0 : i32, i32
  }
  func.func @transform_2(%arg0: i32) -> (i32, i32) {
    %c0_i32 = arith.constant 0 : i32
    %c0_i32_0 = arith.constant 0 : i32
    %c0_i32_1 = arith.constant 0 : i32
    return %c0_i32, %c0_i32_0 : i32, i32
  }
  func.func @transform_3(%arg0: i32) -> (i32, i32) {
    %c0_i32 = arith.constant 0 : i32
    %c0_i32_0 = arith.constant 0 : i32
    %c0_i32_1 = arith.constant 0 : i32
    return %c0_i32, %c0_i32_0 : i32, i32
  }
  func.func @transform_4(%arg0: i32) -> (i32, i32) {
    %c0_i32 = arith.constant 0 : i32
    %c0_i32_0 = arith.constant 0 : i32
    %c0_i32_1 = arith.constant 0 : i32
    return %c0_i32, %c0_i32_0 : i32, i32
  }
  func.func @transform_5(%arg0: i32) -> (i32, i32) {
    %c0_i32 = arith.constant 0 : i32
    %c0_i32_0 = arith.constant 0 : i32
    %c0_i32_1 = arith.constant 0 : i32
    return %c0_i32, %c0_i32_0 : i32, i32
  }
  func.func @transform_6(%arg0: i32) -> (i32, i32) {
    %c0_i32 = arith.constant 0 : i32
    %c0_i32_0 = arith.constant 0 : i32
    %c0_i32_1 = arith.constant 0 : i32
    return %c0_i32, %c0_i32_0 : i32, i32
  }
  func.func @transform_7(%arg0: i32) -> (i32, i32) {
    %c0_i32 = arith.constant 0 : i32
    %c0_i32_0 = arith.constant 0 : i32
    %c0_i32_1 = arith.constant 0 : i32
    return %c0_i32, %c0_i32_0 : i32, i32
  }
  func.func @transform_8(%arg0: i32) -> (i32, i32) {
    %c0_i32 = arith.constant 0 : i32
    %c0_i32_0 = arith.constant 0 : i32
    %c0_i32_1 = arith.constant 0 : i32
    return %c0_i32, %c0_i32_0 : i32, i32
  }
  func.func @transform_9(%arg0: i32) -> (i32, i32) {
    %c0_i32 = arith.constant 0 : i32
    %c0_i32_0 = arith.constant 0 : i32
    return %c0_i32, %arg0 : i32, i32
  }
}

</mosaic_0001>

<llo_original>
// kernel: tpu_custom_call.1
$region0: #{tpu_custom_call.1}
  #allocation0 [shape = 'u32[]', space=smem, size = 0x4, offset = 0x4, fixed_abs, tag = 'smem constant byte address 0x4 - core index']
  #allocation1 [shape = 'u32[72,128]{1,0:T(1,128)}', space=vmem, size = 0x9000, scoped, tag = 'internal scratch']
  #allocation2 [shape = 'f32[1,1]{1,0:T(1,128)S(1)}', space=vmem, size = 0x200, scoped, tag = 'scoped memory for tpu_custom_call.1']
  %s0 = inlined_call_operand.vmem [shape: f32[16,128], index: 0, kind: input, shape index: {}]
  %s1 = inlined_call_operand.vmem [shape: f32[32,16], index: 1, kind: input, shape index: {}]
  %s2 = inlined_call_operand.vmem [shape: f32[32,1], index: 2, kind: input, shape index: {}]
  %s3 = inlined_call_operand.vmem [shape: f32[16,32], index: 3, kind: input, shape index: {}]
  %s4 = inlined_call_operand.vmem [shape: f32[16,1], index: 4, kind: input, shape index: {}]
  %s5 = inlined_call_operand.vmem [shape: f32[16,16], index: 5, kind: input, shape index: {}]
  %s6 = inlined_call_operand.vmem [shape: f32[16,1], index: 6, kind: input, shape index: {}]
  %s7 = inlined_call_operand.vmem [shape: f32[16,1], index: 7, kind: input, shape index: {}]
  %s8 = inlined_call_operand.<no memory space> [shape: f32[1,1], index: 8, kind: input, shape index: {}]
  %s9 = inlined_call_operand.hbm [shape: f32[1,128], index: 9, kind: output, shape index: {}]
  %s10 = sld [smem:[#allocation0]]
  $region46: #{tpu_custom_call.1} parent=0
    _
  %s12 = ssub.s32 1, %s10
  %s13 = scalar_select 0, %s12, %s10
  %v14 = vstv %s8
  %15 = vst [vmem:[#allocation2] sm:$0x1] %v14
  $region1: #{tpu_custom_call.1} parent=0
    #allocation3 [shape = 'u8[512]{0}', space=vmem, size = 0x400, scoped, tag = 'output window, operand 0, single buffered']
    #allocation4 [shape = 's32[1]{0}', space=sflag, size = 0x4, scoped, tag = 'scoped memory for tpu_custom_call.1']
    %16 = vsyncpa [#allocation4], 0
    // Predicated region
    $region2: #{tpu_custom_call.1} parent=1 // pred_check
      _
    $region3: #{tpu_custom_call.1} parent=1 // pred_check_branch
      %18 = sbr.rel (0) target = $region5
    $region4: #{tpu_custom_call.1} parent=1 // pred_region
      _
    $region5: #{tpu_custom_call.1} parent=1 // pred_fallthru
      _
    // Predicated region
    $region6: #{tpu_custom_call.1} parent=1 // pred_check
      _
    $region7: #{tpu_custom_call.1} parent=1 // pred_check_branch
      %20 = sbr.rel (0) target = $region9
    $region8: #{tpu_custom_call.1} parent=1 // pred_region
      _
    $region9: #{tpu_custom_call.1} parent=1 // pred_fallthru
      _
    // Predicated region
    $region10: #{tpu_custom_call.1} parent=1 // pred_check
      _
    $region11: #{tpu_custom_call.1} parent=1 // pred_check_branch
      %22 = sbr.rel (0) target = $region13
    $region12: #{tpu_custom_call.1} parent=1 // pred_region
      _
    $region13: #{tpu_custom_call.1} parent=1 // pred_fallthru
      _
    // Predicated region
    $region14: #{tpu_custom_call.1} parent=1 // pred_check
      _
    $region15: #{tpu_custom_call.1} parent=1 // pred_check_branch
      %24 = sbr.rel (0) target = $region17
    $region16: #{tpu_custom_call.1} parent=1 // pred_region
      _
    $region17: #{tpu_custom_call.1} parent=1 // pred_fallthru
      _
    // Predicated region
    $region18: #{tpu_custom_call.1} parent=1 // pred_check
      _
    $region19: #{tpu_custom_call.1} parent=1 // pred_check_branch
      %26 = sbr.rel (0) target = $region21
    $region20: #{tpu_custom_call.1} parent=1 // pred_region
      _
    $region21: #{tpu_custom_call.1} parent=1 // pred_fallthru
      _
    // Predicated region
    $region22: #{tpu_custom_call.1} parent=1 // pred_check
      _
    $region23: #{tpu_custom_call.1} parent=1 // pred_check_branch
      %28 = sbr.rel (0) target = $region25
    $region24: #{tpu_custom_call.1} parent=1 // pred_region
      _
    $region25: #{tpu_custom_call.1} parent=1 // pred_fallthru
      _
    // Predicated region
    $region26: #{tpu_custom_call.1} parent=1 // pred_check
      _
    $region27: #{tpu_custom_call.1} parent=1 // pred_check_branch
      %30 = sbr.rel (0) target = $region29
    $region28: #{tpu_custom_call.1} parent=1 // pred_region
      _
    $region29: #{tpu_custom_call.1} parent=1 // pred_fallthru
      _
    // Predicated region
    $region30: #{tpu_custom_call.1} parent=1 // pred_check
      _
    $region31: #{tpu_custom_call.1} parent=1 // pred_check_branch
      %32 = sbr.rel (0) target = $region33
    $region32: #{tpu_custom_call.1} parent=1 // pred_region
      _
    $region33: #{tpu_custom_call.1} parent=1 // pred_fallthru
      _
    // Predicated region
    $region34: #{tpu_custom_call.1} parent=1 // pred_check
      _
    $region35: #{tpu_custom_call.1} parent=1 // pred_check_branch
      %34 = sbr.rel (0) target = $region37
    $region36: #{tpu_custom_call.1} parent=1 // pred_region
      _
    $region37: #{tpu_custom_call.1} parent=1 // pred_fallthru
      _
    %v35 = vld [vmem:[%s0] sm:$0xff]
    %v36 = vld [vmem:[%s0 + $0x8] sm:$0xff]
    %v37 = vld [vmem:[%s1] sm:$0xff]
    %v38 = vld [vmem:[%s1 + $0x8] sm:$0xff]
    %v39 = vld [vmem:[%s1 + $0x10] sm:$0xff]
    %v40 = vld [vmem:[%s1 + $0x18] sm:$0xff]
    %v41 = vld [vmem:[%s2] sm:$0xff]
    %v42 = vld [vmem:[%s2 + $0x8] sm:$0xff]
    %v43 = vld [vmem:[%s2 + $0x10] sm:$0xff]
    %v44 = vld [vmem:[%s2 + $0x18] sm:$0xff]
    %46 = vset.pattern.permute.xlu0 0
    %47 = vperm.xlu0 %46, %v41
    %v48 = vpop.permute.xlu0 %47
    %51 = vset.pattern.permute.xlu0 0
    %52 = vperm.xlu0 %51, %v42
    %v53 = vpop.permute.xlu0 %52
    %56 = vset.pattern.permute.xlu0 0
    %57 = vperm.xlu0 %56, %v43
    %v58 = vpop.permute.xlu0 %57
    %61 = vset.pattern.permute.xlu0 0
    %62 = vperm.xlu0 %61, %v44
    %v63 = vpop.permute.xlu0 %62
    %vm65 = vcmask 130048
    %v67 = vsel %vm65, %v37, 0
    %v70 = vsel %vm65, %v38, 0
    %v73 = vsel %vm65, %v39, 0
    %v76 = vsel %vm65, %v40, 0
    %78 = vmatpush.msra.mxu0 0.0
    %79 = vmatpush.msra.mxu0 0.0
    %80 = vmatpush.msra.mxu0 0.0
    %81 = vmatpush.msra.mxu0 0.0
    %82 = vmatpush.msra.mxu0 0.0
    %83 = vmatpush.msra.mxu0 0.0
    %84 = vmatpush.msra.mxu0 0.0
    %85 = vmatpush.msra.mxu0 0.0
    %86 = vmatpush.msra.mxu0 0.0
    %87 = vmatpush.msra.mxu0 0.0
    %88 = vmatpush.msra.mxu0 0.0
    %89 = vmatpush.msra.mxu0 0.0
    %90 = vmatpush.msra.mxu0 0.0
    %91 = vmatpush.msra.mxu0 0.0
    %92 = vmatpush.msra.mxu0 %v36
    %93 = vmatpush.msra.mxu0 %v35
    %94 = vmatmul.f32.gmra.mxu0 %v67
    %v95 = vpop.f32.mrf.mxu0
    %v96 = vadd.f32 %v48, %v95
    %97 = vmatmul.f32.gmra.mxu0 %v70
    %v98 = vpop.f32.mrf.mxu0
    %v99 = vadd.f32 %v53, %v98
    %100 = vmatmul.f32.gmra.mxu0 %v73
    %v101 = vpop.f32.mrf.mxu0
    %v102 = vadd.f32 %v58, %v101
    %103 = vmatmul.f32.gmra.mxu0 %v76
    %v104 = vpop.f32.mrf.mxu0
    %v105 = vadd.f32 %v63, %v104
    %106 = vdwg.mxu0
    %v107 = vtanh.pop %v96
    %v108 = vtanh.pop %v99
    %v109 = vtanh.pop %v102
    %v110 = vtanh.pop %v105
    %v111 = vld [vmem:[%s3] sm:$0xff]
    %v112 = vld [vmem:[%s3 + $0x8] sm:$0xff]
    %v113 = vld [vmem:[%s4] sm:$0xff]
    %v114 = vld [vmem:[%s4 + $0x8] sm:$0xff]
    %116 = vset.pattern.permute.xlu0 0
    %117 = vperm.xlu0 %116, %v113
    %v118 = vpop.permute.xlu0 %117
    %121 = vset.pattern.permute.xlu0 0
    %122 = vperm.xlu0 %121, %v114
    %v123 = vpop.permute.xlu0 %122
    %vm125 = vcmask 261120
    %v127 = vsel %vm125, %v111, 0
    %v130 = vsel %vm125, %v112, 0
    %132 = vmatpush.msra.mxu0 0.0
    %133 = vmatpush.msra.mxu0 0.0
    %134 = vmatpush.msra.mxu0 0.0
    %135 = vmatpush.msra.mxu0 0.0
    %136 = vmatpush.msra.mxu0 0.0
    %137 = vmatpush.msra.mxu0 0.0
    %138 = vmatpush.msra.mxu0 0.0
    %139 = vmatpush.msra.mxu0 0.0
    %140 = vmatpush.msra.mxu0 0.0
    %141 = vmatpush.msra.mxu0 0.0
    %142 = vmatpush.msra.mxu0 0.0
    %143 = vmatpush.msra.mxu0 0.0
    %144 = vmatpush.msra.mxu0 %v110
    %145 = vmatpush.msra.mxu0 %v109
    %146 = vmatpush.msra.mxu0 %v108
    %147 = vmatpush.msra.mxu0 %v107
    %148 = vmatmul.f32.gmra.mxu0 %v127
    %v149 = vpop.f32.mrf.mxu0
    %v150 = vadd.f32 %v118, %v149
    %151 = vmatmul.f32.gmra.mxu0 %v130
    %v152 = vpop.f32.mrf.mxu0
    %v153 = vadd.f32 %v123, %v152
    %154 = vdwg.mxu0
    %v155 = vtanh.pop %v150
    %v156 = vtanh.pop %v153
    %v157 = vld [vmem:[%s5] sm:$0xff]
    %v158 = vld [vmem:[%s5 + $0x8] sm:$0xff]
    %v159 = vld [vmem:[%s6] sm:$0xff]
    %v160 = vld [vmem:[%s6 + $0x8] sm:$0xff]
    %162 = vset.pattern.permute.xlu0 0
    %163 = vperm.xlu0 %162, %v159
    %v164 = vpop.permute.xlu0 %163
    %167 = vset.pattern.permute.xlu0 0
    %168 = vperm.xlu0 %167, %v160
    %v169 = vpop.permute.xlu0 %168
    %v172 = vsel %vm65, %v157, 0
    %v175 = vsel %vm65, %v158, 0
    %177 = vmatpush.msra.mxu0 0.0
    %178 = vmatpush.msra.mxu0 0.0
    %179 = vmatpush.msra.mxu0 0.0
    %180 = vmatpush.msra.mxu0 0.0
    %181 = vmatpush.msra.mxu0 0.0
    %182 = vmatpush.msra.mxu0 0.0
    %183 = vmatpush.msra.mxu0 0.0
    %184 = vmatpush.msra.mxu0 0.0
    %185 = vmatpush.msra.mxu0 0.0
    %186 = vmatpush.msra.mxu0 0.0
    %187 = vmatpush.msra.mxu0 0.0
    %188 = vmatpush.msra.mxu0 0.0
    %189 = vmatpush.msra.mxu0 0.0
    %190 = vmatpush.msra.mxu0 0.0
    %191 = vmatpush.msra.mxu0 %v156
    %192 = vmatpush.msra.mxu0 %v155
    %193 = vmatmul.f32.gmra.mxu0 %v172
    %v194 = vpop.f32.mrf.mxu0
    %v195 = vadd.f32 %v164, %v194
    %196 = vmatmul.f32.gmra.mxu0 %v175
    %v197 = vpop.f32.mrf.mxu0
    %v198 = vadd.f32 %v169, %v197
    %199 = vdwg.mxu0
    %v200 = vtanh.pop %v195
    %v201 = vtanh.pop %v198
    %v202 = vld [vmem:[%s7] sm:$0xff]
    %v203 = vld [vmem:[%s7 + $0x8] sm:$0xff]
    %205 = vset.pattern.permute.xlu0 0
    %206 = vperm.xlu0 %205, %v202
    %v207 = vpop.permute.xlu0 %206
    %210 = vset.pattern.permute.xlu0 0
    %211 = vperm.xlu0 %210, %v203
    %v212 = vpop.permute.xlu0 %211
    %v214 = vmul.f32 %v207, %v200
    %v215 = vmul.f32 %v212, %v201
    %v216 = vadd.f32 %v214, %v215
    %v217 = vrot.slane %v216, 4
    %v218 = vadd.f32 %v216, %v217
    %v219 = vrot.slane %v218, 2
    %v220 = vadd.f32 %v218, %v219
    %v221 = vrot.slane %v220, 1
    %v222 = vadd.f32 %v220, %v221
    %v223 = vld [vmem:[#allocation2] sm:$0x1]
    %225 = vset.pattern.permute.xlu0 0
    %226 = vperm.xlu0 %225, %v223
    %v227 = vpop.permute.xlu0 %226
    %v229 = vperm.slane %v227, 0
    %v230 = vadd.f32 %v222, %v229
    %231 = vst [vmem:[#allocation3] sm:$0x1] %v230
    // Predicated region
    $region38: #{tpu_custom_call.1} parent=1 // pred_check
      _
    $region39: #{tpu_custom_call.1} parent=1 // pred_check_branch
      %233 = sbr.rel (0) target = $region41
    $region40: #{tpu_custom_call.1} parent=1 // pred_region
      %235 = vsyncadd [#allocation4], 0
      %s237 = sshll.u32 [#allocation3], 4
      %s238 = int_to_ptr.vmem [resolvable:$true] %s237
      %s239 = sshll.u32 %s9, 4
      %s240 = int_to_ptr.hbm [resolvable:$true] %s239
      %242 = dma.vmem_to_hbm [thread:$0]  %s238, 16, %s240, [#allocation4]
    $region41: #{tpu_custom_call.1} parent=1 // pred_fallthru
      _
    // Predicated region
    $region42: #{tpu_custom_call.1} parent=1 // pred_check
      _
    $region43: #{tpu_custom_call.1} parent=1 // pred_check_branch
      %244 = sbr.rel (0) target = $region45
    $region44: #{tpu_custom_call.1} parent=1 // pred_region
      %246 = dma.done [#allocation4], 16
    $region45: #{tpu_custom_call.1} parent=1 // pred_fallthru
      _
    %247 = vsyncpa [#allocation4], 1

</llo_original>
